<compile_context>
chip_gen: v6e
topology: v6e:2x2x1
jax: 0.10.0
libtpu: 0.0.40
codegen_flags: <defaults>
</compile_context>

<pallas_src>
import functools
import math

import jax
import jax.numpy as jnp
from jax import lax
from jax.experimental import pallas as pl
from jax.experimental.pallas import tpu as pltpu

UNITS = 64
IN_FEATURES = 4
OUT_FEATURES = 2

_LANES = 128            # vreg lane width
_CHUNK = 256            # in-kernel lane chunk: h = (64, 256) f32 = 16 vregs
_MAX_BATCH_TILE = 4096  # lanes per grid step (review: 4096-8192); VMEM is a non-issue


def _round_up(n, m):
    return ((n + m - 1) // m) * m


def _pick_tile(batch, max_batch_tile):
    """Pick (batch_tile, padded_batch), both multiples of 128.

    Guarantees >= 2 grid steps whenever batch > 128 so v7x's two TensorCores
    both get work (the batch grid axis is "parallel")."""
    if batch <= 0:
        raise ValueError(f"batch must be positive, got {batch}")
    if max_batch_tile <= 0 or max_batch_tile % _LANES != 0:
        raise ValueError(
            f"max_batch_tile must be a positive multiple of {_LANES}, got {max_batch_tile}"
        )
    b_ceil = _round_up(batch, _LANES)
    if b_ceil <= _LANES:
        return _LANES, _LANES                      # tiny RL batch: one 128-lane tile
    half = _round_up((b_ceil + 1) // 2, _LANES)    # split so grid >= 2 steps
    tile = min(max_batch_tile, half)
    b_pad = _round_up(b_ceil, tile)                # exact multiple of tile
    return tile, b_pad


def _dqn_kernel(x_ref, w1_ref, b1_ref, w2_ref, b2_ref, o_ref, *, mxu_bf16):
    # x_ref : (4, TB)    w1_ref: (64, 4)   b1_ref: (64, 1)
    # w2_ref: (2, 64)    b2_ref: (2, 1)    o_ref : (2, TB)
    w1 = w1_ref[...]
    b1 = b1_ref[...]
    w2 = w2_ref[...]
    b2 = b2_ref[...]
    if mxu_bf16:
        w2 = w2.astype(jnp.bfloat16)               # hoisted: cast once per grid step

    tb = x_ref.shape[1]
    ch = min(_CHUNK, tb)
    if tb % ch != 0:                               # tb is always a multiple of 128
        ch = _LANES
    n_chunks = tb // ch

    def chunk_body(c, carry):
        start = pl.multiple_of(c * ch, ch)         # ch is a multiple of 128
        x = x_ref[:, pl.ds(start, ch)]             # (4, ch) lane-dense load

        # ---- Layer 1: h = relu(W1 @ x + b1) as 4 unrolled rank-1 VPU FMAs ----
        h = w1[:, 0:1] * x[0:1, :]                 # (64,1)*(1,ch) -> (64,ch)
        for k in range(1, IN_FEATURES):            # static 4-wide unroll
            h = h + w1[:, k:k + 1] * x[k:k + 1, :]
        h = jnp.maximum(h + b1, 0.0)               # bias + ReLU on VPU, (64, ch)

        # ---- Layer 2: y = W2 @ h + b2 on the MXU (K=64, N=ch lane-dense) ----
        if mxu_bf16:
            h = h.astype(jnp.bfloat16)             # bf16-native MXU on v6e/v7x
        y = jnp.dot(w2, h, preferred_element_type=jnp.float32)
        o_ref[:, pl.ds(start, ch)] = (y + b2).astype(o_ref.dtype)
        return carry

    # Short fixed trip count; full unroll gives the LLO scheduler visibility
    # while keeping each chunk's live set (~16 vregs of h) small -> no spills.
    lax.fori_loop(0, n_chunks, chunk_body, 0, unroll=True)


def _dqn_pallas_call(tile, b_pad, mxu_bf16):
    grid = (b_pad // tile,)
    kernel = functools.partial(_dqn_kernel, mxu_bf16=mxu_bf16)
    return pl.pallas_call(
        kernel,
        out_shape=jax.ShapeDtypeStruct((OUT_FEATURES, b_pad), jnp.float32),
        grid_spec=pltpu.PrefetchScalarGridSpec(
            num_scalar_prefetch=0,
            grid=grid,
            in_specs=[
                # activations: tiled over the batch (lane) axis.
                # (optional sweep: pipeline_mode=pl.Buffered(3) if a profile
                #  ever shows exposed DMA between steps)
                pl.BlockSpec((IN_FEATURES, tile), lambda i: (0, i)),
                # weights / biases: resident across all grid steps
                pl.BlockSpec((UNITS, IN_FEATURES), lambda i: (0, 0)),
                pl.BlockSpec((UNITS, 1), lambda i: (0, 0)),
                pl.BlockSpec((OUT_FEATURES, UNITS), lambda i: (0, 0)),
                pl.BlockSpec((OUT_FEATURES, 1), lambda i: (0, 0)),
            ],
            out_specs=pl.BlockSpec((OUT_FEATURES, tile), lambda i: (0, i)),
        ),
        compiler_params=pltpu.CompilerParams(
            # Batch tiles are independent -> shard across v7x's 2 TensorCores.
            dimension_semantics=("parallel",),
        ),
    )


def dqn_forward_feature_major(x_t, w1, b1, w2, b2, *,
                              max_batch_tile=_MAX_BATCH_TILE, mxu_bf16=False):
    """Feature-major entry: x_t is (4, B) f32, returns (2, B) f32.

    Avoids the batch-major transpose round trips entirely."""
    assert x_t.shape[0] == IN_FEATURES
    B = x_t.shape[1]
    tile, b_pad = _pick_tile(B, max_batch_tile)
    pad = b_pad - B
    x_p = x_t if pad == 0 else jnp.pad(x_t, ((0, 0), (0, pad)))
    b1_col = b1.reshape(UNITS, 1).astype(jnp.float32)
    b2_col = b2.reshape(OUT_FEATURES, 1).astype(jnp.float32)
    y_p = _dqn_pallas_call(tile, b_pad, mxu_bf16)(x_p, w1, b1_col, w2, b2_col)
    # Padded batch columns hold garbage (ReLU(b1) fed through layer 2); the
    # slice below removes them -- do not drop it.
    return y_p if pad == 0 else y_p[:, :B]


def dqn_forward(x, w1, b1, w2, b2, *, max_batch_tile=_MAX_BATCH_TILE, mxu_bf16=False):
    """PyTorch-layout forward.

    x : (B, 4) f32
    w1: (64, 4) f32   (PyTorch Linear layout: (out_features, in_features))
    b1: (64,)  f32
    w2: (2, 64) f32
    b2: (2,)   f32
    returns (B, 2) f32
    """
    # jnp.pad(x.T, ...) lets XLA do pad + transpose in a single pass.
    y_t = dqn_forward_feature_major(x.T, w1, b1, w2, b2,
                                    max_batch_tile=max_batch_tile,
                                    mxu_bf16=mxu_bf16)
    return y_t.T


def init_params(key):
    """Deterministic init mimicking PyTorch nn.Linear default (uniform +/- 1/sqrt(fan_in))."""
    k1, k2, k3, k4 = jax.random.split(key, 4)
    bound1 = 1.0 / math.sqrt(IN_FEATURES)
    bound2 = 1.0 / math.sqrt(UNITS)
    # PyTorch Linear layout: weight is (out_features, in_features).
    w1 = jax.random.uniform(k1, (UNITS, IN_FEATURES), jnp.float32, -bound1, bound1)
    b1 = jax.random.uniform(k2, (UNITS,), jnp.float32, -bound1, bound1)
    w2 = jax.random.uniform(k3, (OUT_FEATURES, UNITS), jnp.float32, -bound2, bound2)
    b2 = jax.random.uniform(k4, (OUT_FEATURES,), jnp.float32, -bound2, bound2)
    return w1, b1, w2, b2


def reference_forward(x, w1, b1, w2, b2):
    h = jnp.maximum(x @ w1.T + b1, 0.0)
    return h @ w2.T + b2


if __name__ == "__main__":
    key = jax.random.PRNGKey(0)
    pkey, xk1, xk2, xk3 = jax.random.split(key, 4)
    w1, b1, w2, b2 = init_params(pkey)

    # 1) Tiny RL-style batch: pads to one 128-lane tile, grid=(1,).
    x_small = jax.random.normal(xk1, (8, IN_FEATURES), jnp.float32)
    out_small = jax.block_until_ready(dqn_forward(x_small, w1, b1, w2, b2))
    ref_small = reference_forward(x_small, w1, b1, w2, b2)
    assert out_small.shape == (8, OUT_FEATURES)
    assert jnp.allclose(out_small, ref_small, atol=1e-5, rtol=1e-5)

    # 2) Ragged batch: tile=384, grid=(2,) (both v7x TCs active), in-kernel
    #    chunking falls back to 128-lane chunks (3 chunks per step).
    x_mid = jax.random.normal(xk2, (600, IN_FEATURES), jnp.float32)
    out_mid = jax.block_until_ready(dqn_forward(x_mid, w1, b1, w2, b2))
    ref_mid = reference_forward(x_mid, w1, b1, w2, b2)
    assert out_mid.shape == (600, OUT_FEATURES)
    assert jnp.allclose(out_mid, ref_mid, atol=1e-5, rtol=1e-5)

    # 3) Larger batch exercising the 256-lane chunk loop (tile=512, 2 chunks per
    #    step, grid=(2,)) in both the default f32 path and the optional bf16-MXU
    #    path for v6e/v7x.
    x_big = jax.random.normal(xk3, (1024, IN_FEATURES), jnp.float32)
    ref_big = reference_forward(x_big, w1, b1, w2, b2)
    out_big = jax.block_until_ready(dqn_forward(x_big, w1, b1, w2, b2))
    assert out_big.shape == (1024, OUT_FEATURES)
    assert jnp.allclose(out_big, ref_big, atol=1e-5, rtol=1e-5)
    out_bf16 = jax.block_until_ready(
        dqn_forward(x_big, w1, b1, w2, b2, mxu_bf16=True)
    )
    assert jnp.allclose(out_bf16, ref_big, atol=3e-2, rtol=3e-2)

    print("KERNEL_OK")
</pallas_src>

<mosaic_0001>
module attributes {stable_mosaic.version = 11 : i64} {
  func.func @_dqn_kernel(%arg0: i32, %arg1: memref<4x128xf32, #tpu.memory_space<vmem>>, %arg2: memref<64x4xf32, #tpu.memory_space<vmem>>, %arg3: memref<64x1xf32, #tpu.memory_space<vmem>>, %arg4: memref<2x64xf32, #tpu.memory_space<vmem>>, %arg5: memref<2x1xf32, #tpu.memory_space<vmem>>, %arg6: memref<2x128xf32, #tpu.memory_space<vmem>>) attributes {dimension_semantics = [#tpu.dimension_semantics<parallel>], iteration_bounds = array<i64: 1>, scalar_prefetch = 0 : i64, scratch_operands = 0 : i64, tpu.core_type = #tpu.core_type<tc>, window_params = [{transform_indices = @transform_0, window_bounds = array<i64: 4, 128>}, {pipeline_mode = #tpu.pipeline_mode<synchronous>, transform_indices = @transform_1, window_bounds = array<i64: 64, 4>}, {pipeline_mode = #tpu.pipeline_mode<synchronous>, transform_indices = @transform_2, window_bounds = array<i64: 64, 1>}, {pipeline_mode = #tpu.pipeline_mode<synchronous>, transform_indices = @transform_3, window_bounds = array<i64: 2, 64>}, {pipeline_mode = #tpu.pipeline_mode<synchronous>, transform_indices = @transform_4, window_bounds = array<i64: 2, 1>}, {transform_indices = @transform_5, window_bounds = array<i64: 2, 128>}]} {
    %c0 = arith.constant 0 : index
    %c0_0 = arith.constant 0 : index
    %0 = vector.load %arg2[%c0, %c0_0] : memref<64x4xf32, #tpu.memory_space<vmem>>, vector<64x4xf32>
    %c0_1 = arith.constant 0 : index
    %c0_2 = arith.constant 0 : index
    %1 = vector.load %arg3[%c0_1, %c0_2] : memref<64x1xf32, #tpu.memory_space<vmem>>, vector<64x1xf32>
    %c0_3 = arith.constant 0 : index
    %c0_4 = arith.constant 0 : index
    %2 = vector.load %arg4[%c0_3, %c0_4] : memref<2x64xf32, #tpu.memory_space<vmem>>, vector<2x64xf32>
    %c0_5 = arith.constant 0 : index
    %c0_6 = arith.constant 0 : index
    %3 = vector.load %arg5[%c0_5, %c0_6] : memref<2x1xf32, #tpu.memory_space<vmem>>, vector<2x1xf32>
    %c0_i32 = arith.constant 0 : i32
    %c128_i32 = arith.constant 128 : i32
    %4 = arith.muli %c0_i32, %c128_i32 : i32
    %5 = tpu.assume_multiple %4, 128 : i32
    %c0_7 = arith.constant 0 : index
    %6 = arith.index_cast %5 : i32 to index
    %7 = vector.load %arg1[%c0_7, %6] : memref<4x128xf32, #tpu.memory_space<vmem>>, vector<4x128xf32>
    %8 = vector.extract_strided_slice %0 {offsets = [0, 0], sizes = [64, 1], strides = [1, 1]} : vector<64x4xf32> to vector<64x1xf32>
    %9 = vector.extract_strided_slice %7 {offsets = [0, 0], sizes = [1, 128], strides = [1, 1]} : vector<4x128xf32> to vector<1x128xf32>
    %10 = vector.broadcast %8 : vector<64x1xf32> to vector<64x128xf32>
    %11 = vector.broadcast %9 : vector<1x128xf32> to vector<64x128xf32>
    %12 = arith.mulf %10, %11 : vector<64x128xf32>
    %13 = vector.extract_strided_slice %0 {offsets = [0, 1], sizes = [64, 1], strides = [1, 1]} : vector<64x4xf32> to vector<64x1xf32>
    %14 = vector.extract_strided_slice %7 {offsets = [1, 0], sizes = [1, 128], strides = [1, 1]} : vector<4x128xf32> to vector<1x128xf32>
    %15 = vector.broadcast %13 : vector<64x1xf32> to vector<64x128xf32>
    %16 = vector.broadcast %14 : vector<1x128xf32> to vector<64x128xf32>
    %17 = arith.mulf %15, %16 : vector<64x128xf32>
    %18 = arith.addf %12, %17 : vector<64x128xf32>
    %19 = vector.extract_strided_slice %0 {offsets = [0, 2], sizes = [64, 1], strides = [1, 1]} : vector<64x4xf32> to vector<64x1xf32>
    %20 = vector.extract_strided_slice %7 {offsets = [2, 0], sizes = [1, 128], strides = [1, 1]} : vector<4x128xf32> to vector<1x128xf32>
    %21 = vector.broadcast %19 : vector<64x1xf32> to vector<64x128xf32>
    %22 = vector.broadcast %20 : vector<1x128xf32> to vector<64x128xf32>
    %23 = arith.mulf %21, %22 : vector<64x128xf32>
    %24 = arith.addf %18, %23 : vector<64x128xf32>
    %25 = vector.extract_strided_slice %0 {offsets = [0, 3], sizes = [64, 1], strides = [1, 1]} : vector<64x4xf32> to vector<64x1xf32>
    %26 = vector.extract_strided_slice %7 {offsets = [3, 0], sizes = [1, 128], strides = [1, 1]} : vector<4x128xf32> to vector<1x128xf32>
    %27 = vector.broadcast %25 : vector<64x1xf32> to vector<64x128xf32>
    %28 = vector.broadcast %26 : vector<1x128xf32> to vector<64x128xf32>
    %29 = arith.mulf %27, %28 : vector<64x128xf32>
    %30 = arith.addf %24, %29 : vector<64x128xf32>
    %31 = vector.broadcast %1 : vector<64x1xf32> to vector<64x128xf32>
    %32 = arith.addf %30, %31 : vector<64x128xf32>
    %cst = arith.constant 0.000000e+00 : f32
    %33 = vector.broadcast %cst : f32 to vector<64x128xf32>
    %34 = arith.maximumf %32, %33 : vector<64x128xf32>
    %cst_8 = arith.constant dense<0.000000e+00> : vector<2x128xf32>
    %35 = tpu.matmul %2, %34, %cst_8 {dimension_numbers = #tpu.dot_dimension_numbers<[1], [0], [0], [1], [0, 0, 1, 1], [], []>} : vector<2x64xf32>, vector<64x128xf32>, vector<2x128xf32> -> vector<2x128xf32>
    %36 = vector.broadcast %3 : vector<2x1xf32> to vector<2x128xf32>
    %37 = arith.addf %35, %36 : vector<2x128xf32>
    %c0_9 = arith.constant 0 : index
    %38 = arith.index_cast %5 : i32 to index
    %39 = vector.load %arg6[%c0_9, %38] : memref<2x128xf32, #tpu.memory_space<vmem>>, vector<2x128xf32>
    tpu.vector_store %arg6[%c0_9, %38], %37 {strides = array<i32>} : memref<2x128xf32, #tpu.memory_space<vmem>>, vector<2x128xf32>,
    %c1_i32 = arith.constant 1 : i32
    return
  }
  func.func @transform_0(%arg0: i32) -> (i32, i32) {
    %c0_i32 = arith.constant 0 : i32
    %c0_i32_0 = arith.constant 0 : i32
    return %c0_i32, %arg0 : i32, i32
  }
  func.func @transform_1(%arg0: i32) -> (i32, i32) {
    %c0_i32 = arith.constant 0 : i32
    %c0_i32_0 = arith.constant 0 : i32
    %c0_i32_1 = arith.constant 0 : i32
    return %c0_i32, %c0_i32_0 : i32, i32
  }
  func.func @transform_2(%arg0: i32) -> (i32, i32) {
    %c0_i32 = arith.constant 0 : i32
    %c0_i32_0 = arith.constant 0 : i32
    %c0_i32_1 = arith.constant 0 : i32
    return %c0_i32, %c0_i32_0 : i32, i32
  }
  func.func @transform_3(%arg0: i32) -> (i32, i32) {
    %c0_i32 = arith.constant 0 : i32
    %c0_i32_0 = arith.constant 0 : i32
    %c0_i32_1 = arith.constant 0 : i32
    return %c0_i32, %c0_i32_0 : i32, i32
  }
  func.func @transform_4(%arg0: i32) -> (i32, i32) {
    %c0_i32 = arith.constant 0 : i32
    %c0_i32_0 = arith.constant 0 : i32
    %c0_i32_1 = arith.constant 0 : i32
    return %c0_i32, %c0_i32_0 : i32, i32
  }
  func.func @transform_5(%arg0: i32) -> (i32, i32) {
    %c0_i32 = arith.constant 0 : i32
    %c0_i32_0 = arith.constant 0 : i32
    return %c0_i32, %arg0 : i32, i32
  }
}

</mosaic_0001>

<llo_original>
// kernel: tpu_custom_call.1
$region0: #{tpu_custom_call.1}
  #allocation0 [shape = 'u32[]', space=smem, size = 0x4, offset = 0x4, fixed_abs, tag = 'smem constant byte address 0x4 - core index']
  #allocation1 [shape = 'u32[144,128]{1,0:T(1,128)}', space=vmem, size = 0x12000, scoped, tag = 'internal scratch']
  %s0 = inlined_call_operand.vmem [shape: f32[4,128], index: 0, kind: input, shape index: {}]
  %s1 = inlined_call_operand.vmem [shape: f32[64,4], index: 1, kind: input, shape index: {}]
  %s2 = inlined_call_operand.vmem [shape: f32[64,1], index: 2, kind: input, shape index: {}]
  %s3 = inlined_call_operand.vmem [shape: f32[2,64], index: 3, kind: input, shape index: {}]
  %s4 = inlined_call_operand.vmem [shape: f32[2,1], index: 4, kind: input, shape index: {}]
  %s5 = inlined_call_operand.hbm [shape: f32[2,128], index: 5, kind: output, shape index: {}]
  %s6 = sld [smem:[#allocation0]]
  $region30: #{tpu_custom_call.1} parent=0
    _
  %s8 = ssub.s32 1, %s6
  %s9 = scalar_select 0, %s8, %s6
  $region1: #{tpu_custom_call.1} parent=0
    #allocation2 [shape = 'u8[1024]{0}', space=vmem, size = 0x400, scoped, tag = 'output window, operand 0, single buffered']
    #allocation3 [shape = 's32[1]{0}', space=sflag, size = 0x4, scoped, tag = 'scoped memory for tpu_custom_call.1']
    %10 = vsyncpa [#allocation3], 0
    // Predicated region
    $region2: #{tpu_custom_call.1} parent=1 // pred_check
      _
    $region3: #{tpu_custom_call.1} parent=1 // pred_check_branch
      %12 = sbr.rel (0) target = $region5
    $region4: #{tpu_custom_call.1} parent=1 // pred_region
      _
    $region5: #{tpu_custom_call.1} parent=1 // pred_fallthru
      _
    // Predicated region
    $region6: #{tpu_custom_call.1} parent=1 // pred_check
      _
    $region7: #{tpu_custom_call.1} parent=1 // pred_check_branch
      %14 = sbr.rel (0) target = $region9
    $region8: #{tpu_custom_call.1} parent=1 // pred_region
      _
    $region9: #{tpu_custom_call.1} parent=1 // pred_fallthru
      _
    // Predicated region
    $region10: #{tpu_custom_call.1} parent=1 // pred_check
      _
    $region11: #{tpu_custom_call.1} parent=1 // pred_check_branch
      %16 = sbr.rel (0) target = $region13
    $region12: #{tpu_custom_call.1} parent=1 // pred_region
      _
    $region13: #{tpu_custom_call.1} parent=1 // pred_fallthru
      _
    // Predicated region
    $region14: #{tpu_custom_call.1} parent=1 // pred_check
      _
    $region15: #{tpu_custom_call.1} parent=1 // pred_check_branch
      %18 = sbr.rel (0) target = $region17
    $region16: #{tpu_custom_call.1} parent=1 // pred_region
      _
    $region17: #{tpu_custom_call.1} parent=1 // pred_fallthru
      _
    // Predicated region
    $region18: #{tpu_custom_call.1} parent=1 // pred_check
      _
    $region19: #{tpu_custom_call.1} parent=1 // pred_check_branch
      %20 = sbr.rel (0) target = $region21
    $region20: #{tpu_custom_call.1} parent=1 // pred_region
      _
    $region21: #{tpu_custom_call.1} parent=1 // pred_fallthru
      _
    %v21 = vld [vmem:[%s1] sm:$0xff]
    %v22 = vld [vmem:[%s1 + $0x8] sm:$0xff]
    %v23 = vld [vmem:[%s1 + $0x10] sm:$0xff]
    %v24 = vld [vmem:[%s1 + $0x18] sm:$0xff]
    %v25 = vld [vmem:[%s1 + $0x20] sm:$0xff]
    %v26 = vld [vmem:[%s1 + $0x28] sm:$0xff]
    %v27 = vld [vmem:[%s1 + $0x30] sm:$0xff]
    %v28 = vld [vmem:[%s1 + $0x38] sm:$0xff]
    %v29 = vld [vmem:[%s2] sm:$0xff]
    %v30 = vld [vmem:[%s2 + $0x8] sm:$0xff]
    %v31 = vld [vmem:[%s2 + $0x10] sm:$0xff]
    %v32 = vld [vmem:[%s2 + $0x18] sm:$0xff]
    %v33 = vld [vmem:[%s2 + $0x20] sm:$0xff]
    %v34 = vld [vmem:[%s2 + $0x28] sm:$0xff]
    %v35 = vld [vmem:[%s2 + $0x30] sm:$0xff]
    %v36 = vld [vmem:[%s2 + $0x38] sm:$0xff]
    %v37 = vld [vmem:[%s3] sm:$0x3]
    %v38 = vld [vmem:[%s4] sm:$0x3]
    %v39 = vld [vmem:[%s0] sm:$0xf]
    %41 = vset.pattern.permute.xlu0 0
    %42 = vperm.xlu0 %41, %v21
    %v43 = vpop.permute.xlu0 %42
    %46 = vset.pattern.permute.xlu0 0
    %47 = vperm.xlu0 %46, %v22
    %v48 = vpop.permute.xlu0 %47
    %51 = vset.pattern.permute.xlu0 0
    %52 = vperm.xlu0 %51, %v23
    %v53 = vpop.permute.xlu0 %52
    %56 = vset.pattern.permute.xlu0 0
    %57 = vperm.xlu0 %56, %v24
    %v58 = vpop.permute.xlu0 %57
    %61 = vset.pattern.permute.xlu0 0
    %62 = vperm.xlu0 %61, %v25
    %v63 = vpop.permute.xlu0 %62
    %66 = vset.pattern.permute.xlu0 0
    %67 = vperm.xlu0 %66, %v26
    %v68 = vpop.permute.xlu0 %67
    %71 = vset.pattern.permute.xlu0 0
    %72 = vperm.xlu0 %71, %v27
    %v73 = vpop.permute.xlu0 %72
    %76 = vset.pattern.permute.xlu0 0
    %77 = vperm.xlu0 %76, %v28
    %v78 = vpop.permute.xlu0 %77
    %v80 = vlaneseq
    %v81 = vshrl.u32 %v80, 7
    %v82 = vsub.s32 0, %v81
    %v83 = vrot.slane %v39, %v82
    %v84 = vmul.f32 %v43, %v83
    %v85 = vmul.f32 %v48, %v83
    %v86 = vmul.f32 %v53, %v83
    %v87 = vmul.f32 %v58, %v83
    %v88 = vmul.f32 %v63, %v83
    %v89 = vmul.f32 %v68, %v83
    %v90 = vmul.f32 %v73, %v83
    %v91 = vmul.f32 %v78, %v83
    %92 = vset.pattern.permute.xlu0 1
    %93 = vperm.xlu0 %92, %v21
    %v94 = vpop.permute.xlu0 %93
    %96 = vset.pattern.permute.xlu0 1
    %97 = vperm.xlu0 %96, %v22
    %v98 = vpop.permute.xlu0 %97
    %100 = vset.pattern.permute.xlu0 1
    %101 = vperm.xlu0 %100, %v23
    %v102 = vpop.permute.xlu0 %101
    %104 = vset.pattern.permute.xlu0 1
    %105 = vperm.xlu0 %104, %v24
    %v106 = vpop.permute.xlu0 %105
    %108 = vset.pattern.permute.xlu0 1
    %109 = vperm.xlu0 %108, %v25
    %v110 = vpop.permute.xlu0 %109
    %112 = vset.pattern.permute.xlu0 1
    %113 = vperm.xlu0 %112, %v26
    %v114 = vpop.permute.xlu0 %113
    %116 = vset.pattern.permute.xlu0 1
    %117 = vperm.xlu0 %116, %v27
    %v118 = vpop.permute.xlu0 %117
    %120 = vset.pattern.permute.xlu0 1
    %121 = vperm.xlu0 %120, %v28
    %v122 = vpop.permute.xlu0 %121
    %v124 = vlaneseq
    %v125 = vshrl.u32 %v124, 7
    %v126 = vsub.s32 1, %v125
    %v127 = vrot.slane %v39, %v126
    %v128 = vmul.f32 %v94, %v127
    %v129 = vmul.f32 %v98, %v127
    %v130 = vmul.f32 %v102, %v127
    %v131 = vmul.f32 %v106, %v127
    %v132 = vmul.f32 %v110, %v127
    %v133 = vmul.f32 %v114, %v127
    %v134 = vmul.f32 %v118, %v127
    %v135 = vmul.f32 %v122, %v127
    %v136 = vadd.f32 %v84, %v128
    %v137 = vadd.f32 %v85, %v129
    %v138 = vadd.f32 %v86, %v130
    %v139 = vadd.f32 %v87, %v131
    %v140 = vadd.f32 %v88, %v132
    %v141 = vadd.f32 %v89, %v133
    %v142 = vadd.f32 %v90, %v134
    %v143 = vadd.f32 %v91, %v135
    %144 = vset.pattern.permute.xlu0 2
    %145 = vperm.xlu0 %144, %v21
    %v146 = vpop.permute.xlu0 %145
    %148 = vset.pattern.permute.xlu0 2
    %149 = vperm.xlu0 %148, %v22
    %v150 = vpop.permute.xlu0 %149
    %152 = vset.pattern.permute.xlu0 2
    %153 = vperm.xlu0 %152, %v23
    %v154 = vpop.permute.xlu0 %153
    %156 = vset.pattern.permute.xlu0 2
    %157 = vperm.xlu0 %156, %v24
    %v158 = vpop.permute.xlu0 %157
    %160 = vset.pattern.permute.xlu0 2
    %161 = vperm.xlu0 %160, %v25
    %v162 = vpop.permute.xlu0 %161
    %164 = vset.pattern.permute.xlu0 2
    %165 = vperm.xlu0 %164, %v26
    %v166 = vpop.permute.xlu0 %165
    %168 = vset.pattern.permute.xlu0 2
    %169 = vperm.xlu0 %168, %v27
    %v170 = vpop.permute.xlu0 %169
    %172 = vset.pattern.permute.xlu0 2
    %173 = vperm.xlu0 %172, %v28
    %v174 = vpop.permute.xlu0 %173
    %v176 = vlaneseq
    %v177 = vshrl.u32 %v176, 7
    %v178 = vsub.s32 2, %v177
    %v179 = vrot.slane %v39, %v178
    %v180 = vmul.f32 %v146, %v179
    %v181 = vmul.f32 %v150, %v179
    %v182 = vmul.f32 %v154, %v179
    %v183 = vmul.f32 %v158, %v179
    %v184 = vmul.f32 %v162, %v179
    %v185 = vmul.f32 %v166, %v179
    %v186 = vmul.f32 %v170, %v179
    %v187 = vmul.f32 %v174, %v179
    %v188 = vadd.f32 %v136, %v180
    %v189 = vadd.f32 %v137, %v181
    %v190 = vadd.f32 %v138, %v182
    %v191 = vadd.f32 %v139, %v183
    %v192 = vadd.f32 %v140, %v184
    %v193 = vadd.f32 %v141, %v185
    %v194 = vadd.f32 %v142, %v186
    %v195 = vadd.f32 %v143, %v187
    %196 = vset.pattern.permute.xlu0 3
    %197 = vperm.xlu0 %196, %v21
    %v198 = vpop.permute.xlu0 %197
    %200 = vset.pattern.permute.xlu0 3
    %201 = vperm.xlu0 %200, %v22
    %v202 = vpop.permute.xlu0 %201
    %204 = vset.pattern.permute.xlu0 3
    %205 = vperm.xlu0 %204, %v23
    %v206 = vpop.permute.xlu0 %205
    %208 = vset.pattern.permute.xlu0 3
    %209 = vperm.xlu0 %208, %v24
    %v210 = vpop.permute.xlu0 %209
    %212 = vset.pattern.permute.xlu0 3
    %213 = vperm.xlu0 %212, %v25
    %v214 = vpop.permute.xlu0 %213
    %216 = vset.pattern.permute.xlu0 3
    %217 = vperm.xlu0 %216, %v26
    %v218 = vpop.permute.xlu0 %217
    %220 = vset.pattern.permute.xlu0 3
    %221 = vperm.xlu0 %220, %v27
    %v222 = vpop.permute.xlu0 %221
    %224 = vset.pattern.permute.xlu0 3
    %225 = vperm.xlu0 %224, %v28
    %v226 = vpop.permute.xlu0 %225
    %v228 = vlaneseq
    %v229 = vshrl.u32 %v228, 7
    %v230 = vsub.s32 3, %v229
    %v231 = vrot.slane %v39, %v230
    %v232 = vmul.f32 %v198, %v231
    %v233 = vmul.f32 %v202, %v231
    %v234 = vmul.f32 %v206, %v231
    %v235 = vmul.f32 %v210, %v231
    %v236 = vmul.f32 %v214, %v231
    %v237 = vmul.f32 %v218, %v231
    %v238 = vmul.f32 %v222, %v231
    %v239 = vmul.f32 %v226, %v231
    %v240 = vadd.f32 %v188, %v232
    %v241 = vadd.f32 %v189, %v233
    %v242 = vadd.f32 %v190, %v234
    %v243 = vadd.f32 %v191, %v235
    %v244 = vadd.f32 %v192, %v236
    %v245 = vadd.f32 %v193, %v237
    %v246 = vadd.f32 %v194, %v238
    %v247 = vadd.f32 %v195, %v239
    %249 = vset.pattern.permute.xlu0 0
    %250 = vperm.xlu0 %249, %v29
    %v251 = vpop.permute.xlu0 %250
    %254 = vset.pattern.permute.xlu0 0
    %255 = vperm.xlu0 %254, %v30
    %v256 = vpop.permute.xlu0 %255
    %259 = vset.pattern.permute.xlu0 0
    %260 = vperm.xlu0 %259, %v31
    %v261 = vpop.permute.xlu0 %260
    %264 = vset.pattern.permute.xlu0 0
    %265 = vperm.xlu0 %264, %v32
    %v266 = vpop.permute.xlu0 %265
    %269 = vset.pattern.permute.xlu0 0
    %270 = vperm.xlu0 %269, %v33
    %v271 = vpop.permute.xlu0 %270
    %274 = vset.pattern.permute.xlu0 0
    %275 = vperm.xlu0 %274, %v34
    %v276 = vpop.permute.xlu0 %275
    %279 = vset.pattern.permute.xlu0 0
    %280 = vperm.xlu0 %279, %v35
    %v281 = vpop.permute.xlu0 %280
    %284 = vset.pattern.permute.xlu0 0
    %285 = vperm.xlu0 %284, %v36
    %v286 = vpop.permute.xlu0 %285
    %v288 = vadd.f32 %v240, %v251
    %v289 = vadd.f32 %v241, %v256
    %v290 = vadd.f32 %v242, %v261
    %v291 = vadd.f32 %v243, %v266
    %v292 = vadd.f32 %v244, %v271
    %v293 = vadd.f32 %v245, %v276
    %v294 = vadd.f32 %v246, %v281
    %v295 = vadd.f32 %v247, %v286
    %v296 = vmax.f32 %v288, 0.0
    %v297 = vmax.f32 %v289, 0.0
    %v298 = vmax.f32 %v290, 0.0
    %v299 = vmax.f32 %v291, 0.0
    %v300 = vmax.f32 %v292, 0.0
    %v301 = vmax.f32 %v293, 0.0
    %v302 = vmax.f32 %v294, 0.0
    %v303 = vmax.f32 %v295, 0.0
    %305 = vset.pattern.permute.xlu0 0
    %306 = vperm.xlu0 %305, %v38
    %v307 = vpop.permute.xlu0 %306
    %vm309 = vcmask 523264
    %v311 = vsel %vm309, %v37, 0
    %313 = vmatprep.subr.mxu0 0.0
    %314 = vmatpush1.msra.mxu0 0.0
    %315 = vmatprep.subr.mxu0 0.0
    %316 = vmatpush1.msra.mxu0 0.0
    %317 = vmatprep.subr.mxu0 0.0
    %318 = vmatpush1.msra.mxu0 0.0
    %319 = vmatprep.subr.mxu0 0.0
    %320 = vmatpush1.msra.mxu0 0.0
    %321 = vmatprep.subr.mxu0 0.0
    %322 = vmatpush1.msra.mxu0 0.0
    %323 = vmatprep.subr.mxu0 0.0
    %324 = vmatpush1.msra.mxu0 0.0
    %325 = vmatprep.subr.mxu0 0.0
    %326 = vmatpush1.msra.mxu0 0.0
    %327 = vmatprep.subr.mxu0 0.0
    %328 = vmatpush1.msra.mxu0 0.0
    %329 = vmatprep.subr.mxu0 0.0
    %330 = vmatpush1.msra.mxu0 %v303
    %331 = vmatprep.subr.mxu0 0.0
    %332 = vmatpush1.msra.mxu0 %v302
    %333 = vmatprep.subr.mxu0 0.0
    %334 = vmatpush1.msra.mxu0 %v301
    %335 = vmatprep.subr.mxu0 0.0
    %336 = vmatpush1.msra.mxu0 %v300
    %337 = vmatprep.subr.mxu0 0.0
    %338 = vmatpush1.msra.mxu0 %v299
    %339 = vmatprep.subr.mxu0 0.0
    %340 = vmatpush1.msra.mxu0 %v298
    %341 = vmatprep.subr.mxu0 0.0
    %342 = vmatpush1.msra.mxu0 %v297
    %343 = vmatprep.subr.mxu0 0.0
    %344 = vmatpush1.msra.mxu0 %v296
    %345 = vmatprep.subr.mxu0 0.0
    %346 = vmatpush2.msra.mxu0 0.0
    %347 = vmatprep.subr.mxu0 0.0
    %348 = vmatpush2.msra.mxu0 0.0
    %349 = vmatprep.subr.mxu0 0.0
    %350 = vmatpush2.msra.mxu0 0.0
    %351 = vmatprep.subr.mxu0 0.0
    %352 = vmatpush2.msra.mxu0 0.0
    %353 = vmatprep.subr.mxu0 0.0
    %354 = vmatpush2.msra.mxu0 0.0
    %355 = vmatprep.subr.mxu0 0.0
    %356 = vmatpush2.msra.mxu0 0.0
    %357 = vmatprep.subr.mxu0 0.0
    %358 = vmatpush2.msra.mxu0 0.0
    %359 = vmatprep.subr.mxu0 0.0
    %360 = vmatpush2.msra.mxu0 0.0
    %361 = vmatprep.subr.mxu0 0.0
    %362 = vmatpush2.msra.mxu0 0.0
    %363 = vmatprep.subr.mxu0 0.0
    %364 = vmatpush2.msra.mxu0 0.0
    %365 = vmatprep.subr.mxu0 0.0
    %366 = vmatpush2.msra.mxu0 0.0
    %367 = vmatprep.subr.mxu0 0.0
    %368 = vmatpush2.msra.mxu0 0.0
    %369 = vmatprep.subr.mxu0 0.0
    %370 = vmatpush2.msra.mxu0 0.0
    %371 = vmatprep.subr.mxu0 0.0
    %372 = vmatpush2.msra.mxu0 0.0
    %373 = vmatprep.subr.mxu0 0.0
    %374 = vmatpush2.msra.mxu0 0.0
    %375 = vmatprep.subr.mxu0 0.0
    %376 = vmatpush2.msra.mxu0 0.0
    %377 = vmatprep.mubr.f32.mxu0 0.0
    %378 = vmatmul.mubr.f32.gmra.mxu0 %v311
    %v379 = vpop.f32.mrf.mxu0
    %v380 = vadd.f32 %v307, %v379
    %v381 = vpop.f32.mrf.mxu0
    %382 = vdwg.mxu0
    %383 = vst [vmem:[#allocation2] sm:$0x3] %v380
    // Predicated region
    $region22: #{tpu_custom_call.1} parent=1 // pred_check
      _
    $region23: #{tpu_custom_call.1} parent=1 // pred_check_branch
      %385 = sbr.rel (0) target = $region25
    $region24: #{tpu_custom_call.1} parent=1 // pred_region
      %s387 = ssub.s32 32, 32
      %388 = vsyncadd [#allocation3], %s387
      %s390 = sshll.u32 [#allocation2], 4
      %s391 = int_to_ptr.vmem [resolvable:$true] %s390
      %393 = dma.vmem_to_hbm [thread:$0]  %s391, 32, %s5, [#allocation3]
    $region25: #{tpu_custom_call.1} parent=1 // pred_fallthru
      _
    // Predicated region
    $region26: #{tpu_custom_call.1} parent=1 // pred_check
      _
    $region27: #{tpu_custom_call.1} parent=1 // pred_check_branch
      %395 = sbr.rel (0) target = $region29
    $region28: #{tpu_custom_call.1} parent=1 // pred_region
      %396 = dma.done [#allocation3], 32
    $region29: #{tpu_custom_call.1} parent=1 // pred_fallthru
      _
    %397 = vsyncpa [#allocation3], 1

</llo_original>
